<compile_context>
chip_gen: v6e
topology: v6e:2x2x1
jax: 0.10.0
libtpu: 0.0.40
codegen_flags: <defaults>
</compile_context>

<pallas_src>
import functools

import jax
import jax.numpy as jnp
from jax.experimental import pallas as pl
from jax.experimental.pallas import tpu as pltpu


def _dma_view_kernel(n_chunks, chunk_rows, x_ref, o_ref, sems):
    """Copy the whole (rows, cols) slab HBM->HBM with n_chunks row-chunk DMAs."""
    copies = []
    for c in range(n_chunks):  # static Python loop: unrolled at trace time
        lo = c * chunk_rows
        cp = pltpu.make_async_copy(
            x_ref.at[pl.ds(lo, chunk_rows), :],
            o_ref.at[pl.ds(lo, chunk_rows), :],
            sems.at[c],
        )
        cp.start()
        copies.append(cp)
    for cp in copies:
        cp.wait()


def _resolve_shape(total, shape):
    """Resolve a torch-style view shape (possibly containing one -1)."""
    shape = tuple(int(s) for s in shape)
    if shape.count(-1) > 1:
        raise ValueError("only one -1 allowed in view shape")
    if -1 in shape:
        known = 1
        for s in shape:
            if s != -1:
                known *= s
        if known == 0 or total % known != 0:
            raise ValueError(f"cannot view {total} elements as {shape}")
        shape = tuple(total // known if s == -1 else s for s in shape)
    prod = 1
    for s in shape:
        prod *= s
    if prod != total:
        raise ValueError(f"cannot view {total} elements as {shape}")
    return shape


# Widest lane-dense column counts to try (all multiples of 128), extended
# upward per the perf review so the slab rows stay long and contiguous.
_LANE_CANDIDATES = (32768, 16384, 8192, 4096, 2048, 1024, 512, 256, 128)


def pallas_view(x, shape):
    """Equivalent of torch View(shape)(x): direct HBM->HBM DMA copy."""
    total = x.size
    out_shape = _resolve_shape(total, shape)
    itemsize = jnp.dtype(x.dtype).itemsize

    # Empty or ragged (not a multiple of 128 elements): a contiguous view is
    # metadata-only, so skip the kernel rather than emit short/masked DMAs.
    if total == 0 or total % 128 != 0:
        return jnp.reshape(x, out_shape)

    # Lane-dense 2D slab: widest multiple-of-128 column count dividing total.
    cols = next(c for c in _LANE_CANDIDATES if total % c == 0)
    rows = total // cols

    # A handful of chunked DMAs (start-all / wait-all) when the row count
    # allows an even split; each chunk is a contiguous run of whole rows.
    if rows % 4 == 0:
        n_chunks = 4
    elif rows % 2 == 0:
        n_chunks = 2
    else:
        n_chunks = 1
    chunk_rows = rows // n_chunks

    x_flat = x.reshape(rows, cols)  # glue: metadata-only on contiguous data

    y_flat = pl.pallas_call(
        functools.partial(_dma_view_kernel, n_chunks, chunk_rows),
        out_shape=jax.ShapeDtypeStruct((rows, cols), x.dtype),
        in_specs=[pl.BlockSpec(memory_space=pl.ANY)],    # raw HBM ref, no auto-DMA
        out_specs=pl.BlockSpec(memory_space=pl.ANY),     # raw HBM ref, no auto-DMA
        scratch_shapes=[pltpu.SemaphoreType.DMA((n_chunks,))],
        cost_estimate=pl.CostEstimate(
            flops=0, transcendentals=0, bytes_accessed=2 * total * itemsize
        ),
    )(x_flat)

    return y_flat.reshape(out_shape)  # glue: attach target shape


class View:
    """JAX/Pallas counterpart of the PyTorch View module."""

    def __init__(self, shape):
        self.shape = tuple(shape)

    def __call__(self, x):
        return pallas_view(x, self.shape)


if __name__ == "__main__":
    key = jax.random.PRNGKey(0)

    # Typical GAN usage: flatten conv features before a linear layer.
    x = jax.random.normal(key, (2, 4, 16, 16), dtype=jnp.float32)
    view = View((-1, 1024))  # 2*4*16*16 = 2048 -> (2, 1024)
    y = jax.block_until_ready(view(x))
    assert y.shape == (2, 1024) and y.dtype == x.dtype
    assert bool(jnp.array_equal(y, x.reshape(2, 1024)))

    # bf16, single wide row (cols = 32768, rows = 1, one DMA).
    x2 = jax.random.normal(key, (4, 8, 32, 32), dtype=jnp.bfloat16)  # 32768 elems
    y2 = jax.block_until_ready(View((4, -1))(x2))
    assert y2.shape == (4, 8192) and y2.dtype == x2.dtype
    assert bool(jnp.array_equal(y2, x2.reshape(4, 8192)))

    # Multi-row slab exercising the chunked-DMA path (rows = 2 -> 2 chunks).
    x3 = jax.random.normal(key, (2, 8, 64, 64), dtype=jnp.float32)  # 65536 elems
    y3 = jax.block_until_ready(View((-1,))(x3))
    assert y3.shape == (65536,) and y3.dtype == x3.dtype
    assert bool(jnp.array_equal(y3, x3.reshape(-1)))

    # Ragged element count -> metadata-only jnp.reshape fallback.
    x4 = jax.random.normal(key, (3, 5), dtype=jnp.float32)
    y4 = jax.block_until_ready(View((5, 3))(x4))
    assert y4.shape == (5, 3)
    assert bool(jnp.array_equal(y4, x4.reshape(5, 3)))

    print("KERNEL_OK")
</pallas_src>

<mosaic_0001>
module attributes {stable_mosaic.version = 11 : i64} {
  func.func @_dma_view_kernel(%arg0: memref<1x2048xf32, #tpu.memory_space<any>>, %arg1: memref<1x2048xf32, #tpu.memory_space<any>>, %arg2: memref<1x!tpu.dma_semaphore, #tpu.memory_space<semaphore_mem>>) attributes {dimension_semantics = [], scalar_prefetch = 0 : i64, scratch_operands = 1 : i64, tpu.core_type = #tpu.core_type<tc>} {
    %c0_i32 = arith.constant 0 : i32
    %c0_i32_0 = arith.constant 0 : i32
    %c0_i32_1 = arith.constant 0 : i32
    %0 = tpu.memref_slice %arg0[%c0_i32_0, %c0_i32_1] : memref<1x2048xf32, #tpu.memory_space<any>> -> memref<1x2048xf32, #tpu.memory_space<any>>
    %c0_i32_2 = arith.constant 0 : i32
    %c0_i32_3 = arith.constant 0 : i32
    %1 = tpu.memref_slice %arg1[%c0_i32_2, %c0_i32_3] : memref<1x2048xf32, #tpu.memory_space<any>> -> memref<1x2048xf32, #tpu.memory_space<any>>
    %2 = tpu.memref_slice %arg2[%c0_i32] : memref<1x!tpu.dma_semaphore, #tpu.memory_space<semaphore_mem>> -> memref<1x!tpu.dma_semaphore, #tpu.memory_space<semaphore_mem>>
    %3 = tpu.memref_squeeze %2 : memref<1x!tpu.dma_semaphore, #tpu.memory_space<semaphore_mem>> -> memref<!tpu.dma_semaphore, #tpu.memory_space<semaphore_mem>>
    tpu.enqueue_dma source(%0 : memref<1x2048xf32, #tpu.memory_space<any>>) target(%1 : memref<1x2048xf32, #tpu.memory_space<any>>) target_semaphore(%3 : memref<!tpu.dma_semaphore, #tpu.memory_space<semaphore_mem>>)
    %c0_i32_4 = arith.constant 0 : i32
    %c0_i32_5 = arith.constant 0 : i32
    %c0_i32_6 = arith.constant 0 : i32
    %4 = tpu.memref_slice %arg0[%c0_i32_5, %c0_i32_6] : memref<1x2048xf32, #tpu.memory_space<any>> -> memref<1x2048xf32, #tpu.memory_space<any>>
    %c0_i32_7 = arith.constant 0 : i32
    %c0_i32_8 = arith.constant 0 : i32
    %5 = tpu.memref_slice %arg1[%c0_i32_7, %c0_i32_8] : memref<1x2048xf32, #tpu.memory_space<any>> -> memref<1x2048xf32, #tpu.memory_space<any>>
    %6 = tpu.memref_slice %arg2[%c0_i32_4] : memref<1x!tpu.dma_semaphore, #tpu.memory_space<semaphore_mem>> -> memref<1x!tpu.dma_semaphore, #tpu.memory_space<semaphore_mem>>
    %7 = tpu.memref_squeeze %6 : memref<1x!tpu.dma_semaphore, #tpu.memory_space<semaphore_mem>> -> memref<!tpu.dma_semaphore, #tpu.memory_space<semaphore_mem>>
    tpu.wait_dma2 semaphore(%7 : memref<!tpu.dma_semaphore, #tpu.memory_space<semaphore_mem>>) src(%4 : memref<1x2048xf32, #tpu.memory_space<any>>) dst(%5 : memref<1x2048xf32, #tpu.memory_space<any>>)
    return
  }
}

</mosaic_0001>

<llo_original>
// kernel: tpu_custom_call.1
$region0: #{tpu_custom_call.1}
  #allocation0 [shape = 'u32[]', space=smem, size = 0x4, offset = 0x4, fixed_abs, tag = 'smem constant byte address 0x4 - core index']
  #allocation1 [shape = 'u32[144,128]{1,0:T(1,128)}', space=vmem, size = 0x12000, scoped, tag = 'internal scratch']
  #allocation2 [shape = 's32[1]{0}', space=sflag, size = 0x4, scoped, tag = 'scratch operand']
  #allocation3 [shape = 's32[]', space=sflag, size = 0x4, offset = 0, fixed_abs, tag = 'sflag constant byte address 0x0 - dummy sync flag']
  #allocation4 [shape = 'u32[0]{0}', space=smem, size = 0, offset = 0, fixed_abs, tag = 'smem constant byte address 0x0 - null']
  %s0 = inlined_call_operand.hbm [shape: f32[1,2048], index: 0, kind: input, shape index: {}]
  %s1 = inlined_call_operand.hbm [shape: f32[1,2048], index: 1, kind: output, shape index: {}]
  %s2 = sld [smem:[#allocation0]]
  $region2: #{tpu_custom_call.1} parent=0
    _
  %s4 = ssub.s32 1, %s2
  %s5 = scalar_select 0, %s4, %s2
  %s7 = sshll.u32 1, 14
  %s8 = sxor.u32 4294967295, %s7
  %12 = dma.general %s0, 256, %s1, [#allocation2], 131072, [#allocation4], 0, 0
  %s13 = smul.u32 1, 16
  %s14 = sshll.u32 %s13, 4
  %15 = dma.done [#allocation2], %s14
  %16 = vsyncmov [#allocation2]
  %s17 = vpop.sfrf %16
  %p18 = scmp.eq.s32.totalorder %s17, 0
  %p19 = pneg %p18
  %21 = shalt.err (%p19)

</llo_original>
